<compile_context>
chip_gen: v7x
topology: tpu7x:2x2x1
jax: 0.10.0
libtpu: 0.0.40
codegen_flags: <defaults>
</compile_context>

<pallas_src>
import functools
import numpy as np

import jax
import jax.numpy as jnp
from jax.experimental import pallas as pl
from jax.experimental.pallas import tpu as pltpu


# Scoped-VMEM cap: large enough to allow big weight tiles (and above v5e's
# 16 MiB default), small enough to fit v7x's 64 MiB physical VMEM.
_VMEM_LIMIT = 48 * 1024 * 1024


# ---------------------------------------------------------------------------
# Tiling helpers
# ---------------------------------------------------------------------------

def _pick_tile(dim, max_tile=1024, step=128, prefer_multi=False):
    """Largest multiple of `step` dividing `dim`, <= max_tile.

    With prefer_multi=True, prefer the largest candidate that still leaves
    >= 2 blocks along the axis (keeps a 'parallel' grid axis shardable across
    v7x's two TensorCores).  Falls back to the full dim when dim is not a
    multiple of `step` (a block equal to the full array dim is always legal).
    """
    if dim % step != 0:
        return dim
    cands = [t for t in range(step, min(max_tile, dim) + 1, step) if dim % t == 0]
    if not cands:
        return dim
    best = max(cands)
    if prefer_multi:
        multi = [t for t in cands if dim // t >= 2]
        if multi:
            best = max(multi)
    return best


def _pick_row_tile(rows, max_tile=256, step=16):
    # bf16 inputs pack 16 rows per sublane group -> row step of 16.
    if rows % step != 0:
        return rows
    cands = [t for t in range(step, min(max_tile, rows) + 1, step) if rows % t == 0]
    return max(cands) if cands else rows


# ---------------------------------------------------------------------------
# Kernel 1: acquisition + SplitPoisson prep + Wiener gain  (fused)
#
# Folded math (alpha = SplitPoisson intensity, N = h*h, |H| == 1 everywhere):
#   diff   = x @ H.T                          (MXU, int8 weights -> bf16)
#   rowsum = sum_k x_k                        (XLU row reduce, per row tile)
#   x_prep = (1/alpha) * diff + (1/alpha - 1) * (H @ 1)
#   var    = (2/alpha^2) * rowsum + 2*N/alpha^2
#   y1     = w^2 / (w^2 + var) * x_prep       (x_0 == 0 so residual == x_prep)
# ---------------------------------------------------------------------------

def _acq_prep_wiener_kernel(x_ref, d_ref, w2_ref, c1h1_ref, y1_ref,
                            dacc_ref, rsum_ref, *, inv_alpha, c2, c3):
    k = pl.program_id(2)

    @pl.when(k == 0)
    def _():
        dacc_ref[...] = jnp.zeros_like(dacc_ref)
        rsum_ref[...] = jnp.zeros_like(rsum_ref)

    xb = x_ref[...]                                    # bf16 (tm, tk), raw x
    d = d_ref[...].astype(jnp.bfloat16)                # int8 +-1 -> bf16 (exact)
    dacc_ref[...] += jnp.dot(xb, d, preferred_element_type=jnp.float32)
    rsum_ref[...] += jnp.sum(xb.astype(jnp.float32), axis=-1, keepdims=True)

    @pl.when(k == pl.num_programs(2) - 1)
    def _():
        x_prep = inv_alpha * dacc_ref[...] + c1h1_ref[...]   # (tm, tn)
        var = c2 * rsum_ref[...] + c3                        # (tm, 1)
        w2 = w2_ref[...]                                     # (1, tn)
        # reciprocal on the EUP slot instead of a VALU divide
        gain = w2 * pl.reciprocal(w2 + var, approx=True)     # (tm, tn)
        y1_ref[...] = (gain * x_prep).astype(y1_ref.dtype)


def pallas_acq_prep_wiener(xv, D, w2, c1h1, alpha):
    bcp, N = xv.shape
    _, M = D.shape
    tm = _pick_row_tile(bcp)
    tn = _pick_tile(M, max_tile=1024, prefer_multi=True)
    tk = _pick_tile(N, max_tile=2048)
    inv_alpha = 1.0 / float(alpha)
    c2 = 2.0 / (float(alpha) ** 2)
    c3 = 2.0 * float(N) / (float(alpha) ** 2)
    kernel = functools.partial(_acq_prep_wiener_kernel,
                               inv_alpha=inv_alpha, c2=c2, c3=c3)
    return pl.pallas_call(
        kernel,
        out_shape=jax.ShapeDtypeStruct((bcp, M), jnp.bfloat16),
        grid_spec=pltpu.PrefetchScalarGridSpec(
            num_scalar_prefetch=0,
            grid=(bcp // tm, M // tn, N // tk),
            in_specs=[
                pl.BlockSpec((tm, tk), lambda i, j, k: (i, k)),   # x   (bf16)
                pl.BlockSpec((tk, tn), lambda i, j, k: (k, j)),   # H.T (int8)
                pl.BlockSpec((1, tn), lambda i, j, k: (0, j)),    # w^2
                pl.BlockSpec((1, tn), lambda i, j, k: (0, j)),    # (1/a-1)*H@1
            ],
            out_specs=pl.BlockSpec((tm, tn), lambda i, j, k: (i, j)),
            scratch_shapes=[pltpu.VMEM((tm, tn), jnp.float32),    # diff acc
                            pltpu.VMEM((tm, 1), jnp.float32)]),   # row sum
        compiler_params=pltpu.CompilerParams(
            dimension_semantics=("parallel", "parallel", "arbitrary"),
            vmem_limit_bytes=_VMEM_LIMIT),
    )(xv, D, w2, c1h1)


# ---------------------------------------------------------------------------
# Kernel 2: folded completion + inverse Hadamard:  x_hat = y1 @ R
# (bf16 streams, f32 MXU accumulation directly into the output block)
# ---------------------------------------------------------------------------

def _recon_matmul_kernel(y1_ref, r_ref, o_ref):
    @pl.when(pl.program_id(2) == 0)
    def _():
        o_ref[...] = jnp.zeros_like(o_ref)

    o_ref[...] += jnp.dot(y1_ref[...], r_ref[...],
                          preferred_element_type=jnp.float32)


def pallas_recon(y1, R):
    bcp, M = y1.shape
    _, N = R.shape
    tm = _pick_row_tile(bcp)
    tn = _pick_tile(N, max_tile=1024, prefer_multi=True)
    tk = _pick_tile(M, max_tile=2048)
    return pl.pallas_call(
        _recon_matmul_kernel,
        out_shape=jax.ShapeDtypeStruct((bcp, N), jnp.float32),
        grid_spec=pltpu.PrefetchScalarGridSpec(
            num_scalar_prefetch=0,
            grid=(bcp // tm, N // tn, M // tk),
            in_specs=[pl.BlockSpec((tm, tk), lambda i, j, k: (i, k)),
                      pl.BlockSpec((tk, tn), lambda i, j, k: (k, j))],
            out_specs=pl.BlockSpec((tm, tn), lambda i, j, k: (i, j))),
        compiler_params=pltpu.CompilerParams(
            dimension_semantics=("parallel", "parallel", "arbitrary"),
            vmem_limit_bytes=_VMEM_LIMIT),
    )(y1, R)


# ---------------------------------------------------------------------------
# Parameter setup (plain numpy/JAX glue; deterministic)
# ---------------------------------------------------------------------------

def make_params(h, M, key):
    N = h * h
    # Sylvester Hadamard matrix -> 2D transform matrix on vectorized images
    Hh = np.array([[1.0]])
    while Hh.shape[0] < h:
        Hh = np.block([[Hh, Hh], [Hh, -Hh]])
    K2d = np.kron(Hh, Hh)                  # (N, N), symmetric, K2d @ K2d = N*I

    k_ord, k_sig = jax.random.split(key)

    # sampling-order permutation (analogue of spyrit's Permutation_Matrix(Ord))
    ord_vals = np.asarray(jax.random.uniform(k_ord, (N,)))
    idx = np.argsort(-ord_vals, kind="stable")
    Pm = np.eye(N)[idx]                    # noise.meas_op.Perm.weight.T

    F = Pm @ K2d                           # permuted full Hadamard  (N, N)
    Hmat = F[:M]                           # forward_H matrix        (M, N)
    # |Hmat| == 1 everywhere for a (permuted) Hadamard matrix: the kernel
    # relies on this to replace the |H| matmul by a running row sum.
    assert np.allclose(np.abs(Hmat), 1.0), "Hadamard-split assumption violated"

    P_split = np.zeros((2 * M, N))         # split measurement matrix (2M, N)
    P_split[0::2] = np.maximum(Hmat, 0.0)
    P_split[1::2] = np.maximum(-Hmat, 0.0)

    # covariance prior sigma (deterministic, well conditioned)
    A = np.asarray(jax.random.normal(k_sig, (N, N)), dtype=np.float64)
    sigma = A @ A.T / N + 0.1 * np.eye(N)

    # DCNet.__init__: sigma_perm = Perm @ sigma @ Perm.T
    sigma_perm = Pm @ sigma @ Pm.T

    # TikhonovMeasurementPriorDiag.__init__
    denoi_w = np.sqrt(np.diag(sigma_perm)[:M])           # Denoise_layer.weight
    Sigma1 = sigma_perm[:M, :M]
    Sigma21 = sigma_perm[M:, :M]
    W_comp = Sigma21 @ np.linalg.inv(Sigma1)             # comp.weight (N-M, M)

    # HadamSplit.inverse as one matrix: y -> (1/N) * (y @ Pm) @ K2d
    A_inv = (Pm @ K2d) / N                               # (N, N)
    H_ones = Hmat @ np.ones((N,))                        # SplitPoisson H@1 term

    # Folded completion + inverse:  x_hat = y1 @ R   (x_0 == 0)
    R = A_inv[:M, :] + W_comp.T @ A_inv[M:, :]           # (M, N)

    alpha = 1.0
    f32 = lambda v: jnp.asarray(v, jnp.float32)
    return dict(
        # kernel operands
        D=jnp.asarray(Hmat.T, jnp.int8),            # (N, M)  +-1, exact in int8
        R=jnp.asarray(R, jnp.bfloat16),             # (M, N)  bf16 weight stream
        denoi_w2=f32(denoi_w ** 2)[None, :],        # (1, M)  precomputed w^2
        c1_H1=f32((1.0 / alpha - 1.0) * H_ones)[None, :],   # (1, M) folded const
        # reference-only operands (validate the algebraic folding)
        P_split_T=f32(P_split.T), H_T=f32(Hmat.T), W_comp_T=f32(W_comp.T),
        A_inv=f32(A_inv), denoi_w=f32(denoi_w)[None, :], H_ones=f32(H_ones)[None, :],
        alpha=alpha, h=h, N=N, M=M,
    )


# ---------------------------------------------------------------------------
# DCNet forward (Pallas) and pure-jnp reference (original step-by-step math)
# ---------------------------------------------------------------------------

def dcnet_forward(params, x):
    """x: (B, C, h, w) float32 (NCHW). Returns (B, C, h, w)."""
    B, C, _, _ = x.shape
    N, M, h, alpha = params["N"], params["M"], params["h"], params["alpha"]
    bc = B * C
    xv = x.reshape(bc, N)                                # DCNet.forward view

    # pad batch rows to a multiple of 16 (bf16 packs 16 rows / sublane group)
    bcp = max(16, ((bc + 15) // 16) * 16)
    if bcp != bc:
        xv = jnp.pad(xv, ((0, bcp - bc), (0, 0)))
    xv = xv.astype(jnp.bfloat16)                         # halve x-panel traffic

    # acquisition + SplitPoisson prep + Tikhonov Wiener gain, fused (x_0 == 0
    # so forward_H(x_0) == 0 and the residual is just x_prep)
    y1 = pallas_acq_prep_wiener(xv, params["D"], params["denoi_w2"],
                                params["c1_H1"], alpha)

    # completion + inverse Hadamard folded into one matmul; "x_0 +" dropped
    x_hat = pallas_recon(y1, params["R"])

    # denoi = nn.Identity()
    return x_hat[:bc].reshape(B, C, h, h)


def dcnet_reference(params, x):
    """Pure-jnp reference following the original module step by step."""
    B, C, _, _ = x.shape
    N, M, h, alpha = params["N"], params["M"], params["h"], params["alpha"]
    bc = B * C
    xv = x.reshape(bc, N)
    y = ((xv + 1.0) * 0.5) @ params["P_split_T"]          # NoNoise + HadamSplit
    ye, yo = y[:, 0::2], y[:, 1::2]                       # SplitPoisson
    x_prep = 2.0 * (ye - yo) / alpha - params["H_ones"]
    var_noi = 4.0 * (ye + yo) / (alpha ** 2)
    x0 = jnp.zeros((bc, N), jnp.float32)                  # DCNet.reconstruct
    hx0 = x0 @ params["H_T"]
    w2 = params["denoi_w"] ** 2
    y1 = (w2 / (w2 + var_noi)) * (x_prep - hx0)           # Tikhonov DC
    y2 = y1 @ params["W_comp_T"]
    x_hat = x0 + jnp.concatenate([y1, y2], axis=-1) @ params["A_inv"]
    return x_hat.reshape(B, C, h, h)


# ---------------------------------------------------------------------------

if __name__ == "__main__":
    B, C, h = 2, 4, 16
    N = h * h
    M = N // 2                       # number of kept Hadamard measurements

    key = jax.random.PRNGKey(0)
    k_param, k_x = jax.random.split(key)
    params = make_params(h, M, k_param)

    x = jax.random.uniform(k_x, (B, C, h, h), jnp.float32, minval=-1.0, maxval=1.0)

    out = dcnet_forward(params, x)
    out = jax.block_until_ready(out)

    ref = jax.block_until_ready(dcnet_reference(params, x))
    np.testing.assert_allclose(np.asarray(out), np.asarray(ref),
                               rtol=1e-2, atol=1e-2)
    assert out.shape == (B, C, h, h)

    print("KERNEL_OK")
</pallas_src>

<mosaic_0001>
module attributes {stable_mosaic.version = 11 : i64} {
  func.func @_acq_prep_wiener_kernel(%arg0: i32, %arg1: i32, %arg2: i32, %arg3: memref<16x256xbf16, #tpu.memory_space<vmem>>, %arg4: memref<256x128xi8, #tpu.memory_space<vmem>>, %arg5: memref<1x128xf32, #tpu.memory_space<vmem>>, %arg6: memref<1x128xf32, #tpu.memory_space<vmem>>, %arg7: memref<16x128xbf16, #tpu.memory_space<vmem>>, %arg8: memref<16x128xf32, #tpu.memory_space<vmem>>, %arg9: memref<16x1xf32, #tpu.memory_space<vmem>>) attributes {dimension_semantics = [#tpu.dimension_semantics<parallel>, #tpu.dimension_semantics<parallel>, #tpu.dimension_semantics<arbitrary>], iteration_bounds = array<i64: 1, 1, 1>, scalar_prefetch = 0 : i64, scratch_operands = 2 : i64, tpu.core_type = #tpu.core_type<tc>, window_params = [{transform_indices = @transform_0, window_bounds = array<i64: 16, 256>}, {transform_indices = @transform_1, window_bounds = array<i64: 256, 128>}, {transform_indices = @transform_2, window_bounds = array<i64: 1, 128>}, {transform_indices = @transform_3, window_bounds = array<i64: 1, 128>}, {transform_indices = @transform_4, window_bounds = array<i64: 16, 128>}]} {
    %c0_i32 = arith.constant 0 : i32
    %0 = arith.cmpi eq, %arg2, %c0_i32 : i32
    %1 = arith.extui %0 : i1 to i32
    %c0_i32_0 = arith.constant 0 : i32
    %2 = arith.cmpi ne, %1, %c0_i32_0 : i32
    scf.if %2 {
      %cst_15 = arith.constant 0.000000e+00 : f32
      %19 = vector.broadcast %cst_15 : f32 to vector<16x128xf32>
      %c0_16 = arith.constant 0 : index
      %c0_17 = arith.constant 0 : index
      %20 = vector.load %arg8[%c0_16, %c0_17] : memref<16x128xf32, #tpu.memory_space<vmem>>, vector<16x128xf32>
      tpu.vector_store %arg8[%c0_16, %c0_17], %19 {strides = array<i32>} : memref<16x128xf32, #tpu.memory_space<vmem>>, vector<16x128xf32>,
      %cst_18 = arith.constant 0.000000e+00 : f32
      %21 = vector.broadcast %cst_18 : f32 to vector<16x1xf32>
      %c0_19 = arith.constant 0 : index
      %c0_20 = arith.constant 0 : index
      %22 = vector.load %arg9[%c0_19, %c0_20] : memref<16x1xf32, #tpu.memory_space<vmem>>, vector<16x1xf32>
      tpu.vector_store %arg9[%c0_19, %c0_20], %21 {strides = array<i32>} : memref<16x1xf32, #tpu.memory_space<vmem>>, vector<16x1xf32>,
    } else {
    }
    %c0 = arith.constant 0 : index
    %c0_1 = arith.constant 0 : index
    %3 = vector.load %arg3[%c0, %c0_1] : memref<16x256xbf16, #tpu.memory_space<vmem>>, vector<16x256xbf16>
    %c0_2 = arith.constant 0 : index
    %c0_3 = arith.constant 0 : index
    %4 = vector.load %arg4[%c0_2, %c0_3] : memref<256x128xi8, #tpu.memory_space<vmem>>, vector<256x128xi8>
    %5 = arith.sitofp %4 : vector<256x128xi8> to vector<256x128xbf16>
    %c0_4 = arith.constant 0 : index
    %c0_5 = arith.constant 0 : index
    %6 = vector.load %arg8[%c0_4, %c0_5] : memref<16x128xf32, #tpu.memory_space<vmem>>, vector<16x128xf32>
    %cst = arith.constant dense<0.000000e+00> : vector<16x128xf32>
    %7 = tpu.matmul %3, %5, %cst {dimension_numbers = #tpu.dot_dimension_numbers<[1], [0], [0], [1], [0, 0, 1, 1], [], []>} : vector<16x256xbf16>, vector<256x128xbf16>, vector<16x128xf32> -> vector<16x128xf32>
    %8 = arith.addf %6, %7 : vector<16x128xf32>
    %c0_6 = arith.constant 0 : index
    %c0_7 = arith.constant 0 : index
    %9 = vector.load %arg8[%c0_6, %c0_7] : memref<16x128xf32, #tpu.memory_space<vmem>>, vector<16x128xf32>
    tpu.vector_store %arg8[%c0_6, %c0_7], %8 {strides = array<i32>} : memref<16x128xf32, #tpu.memory_space<vmem>>, vector<16x128xf32>,
    %c0_8 = arith.constant 0 : index
    %c0_9 = arith.constant 0 : index
    %10 = vector.load %arg9[%c0_8, %c0_9] : memref<16x1xf32, #tpu.memory_space<vmem>>, vector<16x1xf32>
    %11 = arith.extf %3 : vector<16x256xbf16> to vector<16x256xf32>
    %cst_10 = arith.constant dense<0.000000e+00> : vector<16xf32>
    %12 = vector.multi_reduction <add>, %11, %cst_10 [1] : vector<16x256xf32> to vector<16xf32>
    %13 = vector.shape_cast %12 : vector<16xf32> to vector<16x1xf32>
    %14 = arith.addf %10, %13 : vector<16x1xf32>
    %c0_11 = arith.constant 0 : index
    %c0_12 = arith.constant 0 : index
    %15 = vector.load %arg9[%c0_11, %c0_12] : memref<16x1xf32, #tpu.memory_space<vmem>>, vector<16x1xf32>
    tpu.vector_store %arg9[%c0_11, %c0_12], %14 {strides = array<i32>} : memref<16x1xf32, #tpu.memory_space<vmem>>, vector<16x1xf32>,
    %c0_i32_13 = arith.constant 0 : i32
    %16 = arith.cmpi eq, %arg2, %c0_i32_13 : i32
    %17 = arith.extui %16 : i1 to i32
    %c0_i32_14 = arith.constant 0 : i32
    %18 = arith.cmpi ne, %17, %c0_i32_14 : i32
    scf.if %18 {
      %c0_15 = arith.constant 0 : index
      %c0_16 = arith.constant 0 : index
      %19 = vector.load %arg8[%c0_15, %c0_16] : memref<16x128xf32, #tpu.memory_space<vmem>>, vector<16x128xf32>
      %cst_17 = arith.constant 1.000000e+00 : f32
      %20 = vector.broadcast %cst_17 : f32 to vector<16x128xf32>
      %21 = arith.mulf %20, %19 : vector<16x128xf32>
      %c0_18 = arith.constant 0 : index
      %c0_19 = arith.constant 0 : index
      %22 = vector.load %arg6[%c0_18, %c0_19] : memref<1x128xf32, #tpu.memory_space<vmem>>, vector<1x128xf32>
      %23 = vector.broadcast %22 : vector<1x128xf32> to vector<16x128xf32>
      %24 = arith.addf %21, %23 : vector<16x128xf32>
      %c0_20 = arith.constant 0 : index
      %c0_21 = arith.constant 0 : index
      %25 = vector.load %arg9[%c0_20, %c0_21] : memref<16x1xf32, #tpu.memory_space<vmem>>, vector<16x1xf32>
      %cst_22 = arith.constant 2.000000e+00 : f32
      %26 = vector.broadcast %cst_22 : f32 to vector<16x1xf32>
      %27 = arith.mulf %26, %25 : vector<16x1xf32>
      %cst_23 = arith.constant 5.120000e+02 : f32
      %28 = vector.broadcast %cst_23 : f32 to vector<16x1xf32>
      %29 = arith.addf %27, %28 : vector<16x1xf32>
      %c0_24 = arith.constant 0 : index
      %c0_25 = arith.constant 0 : index
      %30 = vector.load %arg5[%c0_24, %c0_25] : memref<1x128xf32, #tpu.memory_space<vmem>>, vector<1x128xf32>
      %31 = vector.broadcast %30 : vector<1x128xf32> to vector<16x128xf32>
      %32 = vector.broadcast %29 : vector<16x1xf32> to vector<16x128xf32>
      %33 = arith.addf %31, %32 : vector<16x128xf32>
      %34 = tpu.reciprocal %33 {approx = true} : vector<16x128xf32> -> vector<16x128xf32>
      %35 = vector.broadcast %30 : vector<1x128xf32> to vector<16x128xf32>
      %36 = arith.mulf %35, %34 : vector<16x128xf32>
      %37 = arith.mulf %36, %24 : vector<16x128xf32>
      %38 = arith.truncf %37 : vector<16x128xf32> to vector<16x128xbf16>
      %c0_26 = arith.constant 0 : index
      %c0_27 = arith.constant 0 : index
      %39 = vector.load %arg7[%c0_26, %c0_27] : memref<16x128xbf16, #tpu.memory_space<vmem>>, vector<16x128xbf16>
      tpu.vector_store %arg7[%c0_26, %c0_27], %38 {strides = array<i32>} : memref<16x128xbf16, #tpu.memory_space<vmem>>, vector<16x128xbf16>,
    } else {
    }
    return
  }
  func.func @transform_0(%arg0: i32, %arg1: i32, %arg2: i32) -> (i32, i32) {
    %c0_i32 = arith.constant 0 : i32
    return %arg0, %arg2 : i32, i32
  }
  func.func @transform_1(%arg0: i32, %arg1: i32, %arg2: i32) -> (i32, i32) {
    %c0_i32 = arith.constant 0 : i32
    return %arg2, %arg1 : i32, i32
  }
  func.func @transform_2(%arg0: i32, %arg1: i32, %arg2: i32) -> (i32, i32) {
    %c0_i32 = arith.constant 0 : i32
    %c0_i32_0 = arith.constant 0 : i32
    return %c0_i32, %arg1 : i32, i32
  }
  func.func @transform_3(%arg0: i32, %arg1: i32, %arg2: i32) -> (i32, i32) {
    %c0_i32 = arith.constant 0 : i32
    %c0_i32_0 = arith.constant 0 : i32
    return %c0_i32, %arg1 : i32, i32
  }
  func.func @transform_4(%arg0: i32, %arg1: i32, %arg2: i32) -> (i32, i32) {
    %c0_i32 = arith.constant 0 : i32
    return %arg0, %arg1 : i32, i32
  }
}

</mosaic_0001>

<llo_original>
// kernel: tpu_custom_call.1
$region0: #{tpu_custom_call.1}
  #allocation0 [shape = 'u32[]', space=smem, size = 0x4, offset = 0x4, fixed_abs, tag = 'smem constant byte address 0x4 - core index']
  #allocation1 [shape = 'u32[144,128]{1,0:T(1,128)}', space=vmem, size = 0x12000, scoped, tag = 'internal scratch']
  #allocation2 [shape = 'f32[16,128]{1,0:T(8,128)}', space=vmem, size = 0x2000, scoped, tag = 'scratch operand']
  #allocation3 [shape = 'f32[16,1]{1,0:T(8,128)}', space=vmem, size = 0x2000, scoped, tag = 'scratch operand']
  %s0 = inlined_call_operand.hbm [shape: bf16[16,256], index: 0, kind: input, shape index: {}]
  %s1 = inlined_call_operand.hbm [shape: s8[256,128], index: 1, kind: input, shape index: {}]
  %s2 = inlined_call_operand.vmem [shape: f32[1,128], index: 2, kind: input, shape index: {}]
  %s3 = inlined_call_operand.vmem [shape: f32[1,128], index: 3, kind: input, shape index: {}]
  %s4 = inlined_call_operand.hbm [shape: bf16[16,128], index: 4, kind: output, shape index: {}]
  %s5 = sld [smem:[#allocation0]]
  $region42: #{tpu_custom_call.1} parent=0
    _
  %s7 = ssub.s32 1, %s5
  %s8 = scalar_select 0, %s7, %s5
  $region1: #{tpu_custom_call.1} parent=0
    #allocation4 [shape = 'u8[8192]{0}', space=vmem, size = 0x2000, scoped, tag = 'input window, operand 0, single buffered']
    #allocation5 [shape = 's32[1]{0}', space=sflag, size = 0x4, scoped, tag = 'scoped memory for tpu_custom_call.1']
    #allocation6 [shape = 's32[1]{0}', space=sflag, size = 0x4, scoped, tag = 'scoped memory for tpu_custom_call.1']
    #allocation7 [shape = 'u8[32768]{0}', space=vmem, size = 0x8000, scoped, tag = 'input window, operand 1, single buffered']
    #allocation8 [shape = 's32[1]{0}', space=sflag, size = 0x4, scoped, tag = 'scoped memory for tpu_custom_call.1']
    #allocation9 [shape = 'u8[4096]{0}', space=vmem, size = 0x1000, scoped, tag = 'output window, operand 0, single buffered']
    %9 = vsyncpa [#allocation5], 0
    %10 = vsyncpa [#allocation8], 0
    %11 = vsyncpa [#allocation6], 0
    // Predicated region
    $region2: #{tpu_custom_call.1} parent=1 // pred_check
      _
    $region3: #{tpu_custom_call.1} parent=1 // pred_check_branch
      %13 = sbr.rel (0) target = $region5
    $region4: #{tpu_custom_call.1} parent=1 // pred_region
      %s15 = ssub.s32 256, 256
      %16 = vsyncadd [#allocation5], %s15
      %s17 = sshll.u32 [#allocation4], 4
      %s18 = int_to_ptr.vmem [resolvable:$true] %s17
      %23 = dma.hbm_to_vmem [thread:$0]  %s0, 256, %s18, [#allocation5], 128, 128, 8
    $region5: #{tpu_custom_call.1} parent=1 // pred_fallthru
      _
    // Predicated region
    $region6: #{tpu_custom_call.1} parent=1 // pred_check
      _
    $region7: #{tpu_custom_call.1} parent=1 // pred_check_branch
      %25 = sbr.rel (0) target = $region9
    $region8: #{tpu_custom_call.1} parent=1 // pred_region
      %s27 = ssub.s32 1024, 1024
      %28 = vsyncadd [#allocation8], %s27
      %s29 = sshll.u32 [#allocation7], 4
      %s30 = int_to_ptr.vmem [resolvable:$true] %s29
      %35 = dma.hbm_to_vmem [thread:$0]  %s1, 1024, %s30, [#allocation8], 128, 128, 8
    $region9: #{tpu_custom_call.1} parent=1 // pred_fallthru
      _
    // Predicated region
    $region10: #{tpu_custom_call.1} parent=1 // pred_check
      _
    $region11: #{tpu_custom_call.1} parent=1 // pred_check_branch
      %37 = sbr.rel (0) target = $region13
    $region12: #{tpu_custom_call.1} parent=1 // pred_region
      _
    $region13: #{tpu_custom_call.1} parent=1 // pred_fallthru
      _
    // Predicated region
    $region14: #{tpu_custom_call.1} parent=1 // pred_check
      _
    $region15: #{tpu_custom_call.1} parent=1 // pred_check_branch
      %39 = sbr.rel (0) target = $region17
    $region16: #{tpu_custom_call.1} parent=1 // pred_region
      _
    $region17: #{tpu_custom_call.1} parent=1 // pred_fallthru
      _
    // Predicated region
    $region18: #{tpu_custom_call.1} parent=1 // pred_check
      _
    $region19: #{tpu_custom_call.1} parent=1 // pred_check_branch
      %41 = sbr.rel (0) target = $region21
    $region20: #{tpu_custom_call.1} parent=1 // pred_region
      %42 = dma.done [#allocation5], 256
    $region21: #{tpu_custom_call.1} parent=1 // pred_fallthru
      _
    // Predicated region
    $region22: #{tpu_custom_call.1} parent=1 // pred_check
      _
    $region23: #{tpu_custom_call.1} parent=1 // pred_check_branch
      %44 = sbr.rel (0) target = $region25
    $region24: #{tpu_custom_call.1} parent=1 // pred_region
      %45 = dma.done [#allocation8], 1024
    $region25: #{tpu_custom_call.1} parent=1 // pred_fallthru
      _
    %p47 = scmp.eq.s32.totalorder 0, 0
    // Predicated region
    $region26: #{tpu_custom_call.1} parent=1 // pred_check
      %p48 = pneg %p47
    $region27: #{tpu_custom_call.1} parent=1 // pred_check_branch
      %50 = sbr.rel (%p48) target = $region29
    $region28: #{tpu_custom_call.1} parent=1 // pred_region
      %51 = vst [vmem:[#allocation2] sm:$0xff] 0.0
      %52 = vst [vmem:[#allocation2 + $0x8] sm:$0xff] 0.0
      %vm53 = vcmask 7168
      %54 = vst.msk [vmem:[#allocation3] sm:$0xff] %vm53, 0.0
      %55 = vst.msk [vmem:[#allocation3 + $0x8] sm:$0xff] %vm53, 0.0
    $region29: #{tpu_custom_call.1} parent=1 // pred_fallthru
      _
    %v56 = vld [vmem:[#allocation4] sm:$0xff]
    %v57 = vld [vmem:[#allocation4 + $0x8] sm:$0xff]
    %v58 = vld [vmem:[#allocation7] sm:$0xff]
    %v59 = vld [vmem:[#allocation7 + $0x8] sm:$0xff]
    %v60 = vld [vmem:[#allocation7 + $0x10] sm:$0xff]
    %v61 = vld [vmem:[#allocation7 + $0x18] sm:$0xff]
    %v62 = vld [vmem:[#allocation7 + $0x20] sm:$0xff]
    %v63 = vld [vmem:[#allocation7 + $0x28] sm:$0xff]
    %v64 = vld [vmem:[#allocation7 + $0x30] sm:$0xff]
    %v65 = vld [vmem:[#allocation7 + $0x38] sm:$0xff]
    %v66 = vunpack.c.l.s8.bf16 %v58
    %v67 = vunpack.c.h.s8.bf16 %v58
    %v68 = vunpack.c.l.s8.bf16 %v59
    %v69 = vunpack.c.h.s8.bf16 %v59
    %v70 = vunpack.c.l.s8.bf16 %v60
    %v71 = vunpack.c.h.s8.bf16 %v60
    %v72 = vunpack.c.l.s8.bf16 %v61
    %v73 = vunpack.c.h.s8.bf16 %v61
    %v74 = vunpack.c.l.s8.bf16 %v62
    %v75 = vunpack.c.h.s8.bf16 %v62
    %v76 = vunpack.c.l.s8.bf16 %v63
    %v77 = vunpack.c.h.s8.bf16 %v63
    %v78 = vunpack.c.l.s8.bf16 %v64
    %v79 = vunpack.c.h.s8.bf16 %v64
    %v80 = vunpack.c.l.s8.bf16 %v65
    %v81 = vunpack.c.h.s8.bf16 %v65
    %v82 = vld [vmem:[#allocation2] sm:$0xff]
    %v83 = vld [vmem:[#allocation2 + $0x8] sm:$0xff]
    %v86 = vunpack.c.l.b16 %v56
    %v87 = vunpack.c.h.b16 %v56
    %v88 = vunpack.c.l.b16 %v57
    %v89 = vunpack.c.h.b16 %v57
    %v90 = vpack.c.b16 %v88, %v86
    %v91 = vpack.c.b16 %v89, %v87
    %94 = vmatprep.subr.bf16.mxu0 0
    %95 = vmatpush1.bf16.msra.mxu0 %v66
    %96 = vmatprep.subr.bf16.mxu0 0
    %97 = vmatpush1.bf16.msra.mxu0 %v67
    %98 = vmatprep.subr.bf16.mxu0 0
    %99 = vmatpush1.bf16.msra.mxu0 %v68
    %100 = vmatprep.subr.bf16.mxu0 0
    %101 = vmatpush1.bf16.msra.mxu0 %v69
    %102 = vmatprep.subr.bf16.mxu0 0
    %103 = vmatpush1.bf16.msra.mxu0 %v70
    %104 = vmatprep.subr.bf16.mxu0 0
    %105 = vmatpush1.bf16.msra.mxu0 %v71
    %106 = vmatprep.subr.bf16.mxu0 0
    %107 = vmatpush1.bf16.msra.mxu0 %v72
    %108 = vmatprep.subr.bf16.mxu0 0
    %109 = vmatpush1.bf16.msra.mxu0 %v73
    %110 = vmatprep.subr.bf16.mxu0 0
    %111 = vmatpush1.bf16.msra.mxu0 %v74
    %112 = vmatprep.subr.bf16.mxu0 0
    %113 = vmatpush1.bf16.msra.mxu0 %v75
    %114 = vmatprep.subr.bf16.mxu0 0
    %115 = vmatpush1.bf16.msra.mxu0 %v76
    %116 = vmatprep.subr.bf16.mxu0 0
    %117 = vmatpush1.bf16.msra.mxu0 %v77
    %118 = vmatprep.subr.bf16.mxu0 0
    %119 = vmatpush1.bf16.msra.mxu0 %v78
    %120 = vmatprep.subr.bf16.mxu0 0
    %121 = vmatpush1.bf16.msra.mxu0 %v79
    %122 = vmatprep.subr.bf16.mxu0 0
    %123 = vmatpush1.bf16.msra.mxu0 %v80
    %124 = vmatprep.subr.bf16.mxu0 0
    %125 = vmatpush1.bf16.msra.mxu0 %v81
    %126 = vmatprep.mubr.bf16.mxu0 %v91
    %127 = vmatmul.mubr.bf16.gmra.mrb[0].mxu0 %v90
    %v128 = vpop.f32.mrb[0].mxu0
    %v129 = vadd.f32 0.0, %v128
    %v130 = vpop.f32.mrb[0].mxu0
    %v131 = vpop.f32.mrb[0].mxu0
    %v132 = vadd.f32 0.0, %v131
    %v133 = vpop.f32.mrb[0].mxu0
    %134 = vdwg.mxu0
    %v135 = vadd.f32 %v82, %v129
    %v136 = vadd.f32 %v83, %v132
    %137 = vst [vmem:[#allocation2] sm:$0xff] %v135
    %138 = vst [vmem:[#allocation2 + $0x8] sm:$0xff] %v136
    %v139 = vld [vmem:[#allocation3] sm:$0xff]
    %v140 = vld [vmem:[#allocation3 + $0x8] sm:$0xff]
    %v141 = vunpack.c.l.bf16 %v56
    %v142 = vunpack.c.h.bf16 %v56
    %v143 = vunpack.c.l.bf16 %v57
    %v144 = vunpack.c.h.bf16 %v57
    %v145 = vadd.f32 %v141, %v142
    %146 = vadd.xlane.f32.xlu0 %v145
    %v147 = vpop.xlane.xlu0 %146
    %v148 = vadd.f32 %v143, %v144
    %149 = vadd.xlane.f32.xlu0 %v148
    %v150 = vpop.xlane.xlu0 %149
    %v151 = vadd.f32 %v139, %v147
    %v152 = vadd.f32 %v140, %v150
    %vm153 = vcmask 7168
    %154 = vst.msk [vmem:[#allocation3] sm:$0xff] %vm153, %v151
    %155 = vst.msk [vmem:[#allocation3 + $0x8] sm:$0xff] %vm153, %v152
    // Predicated region
    $region30: #{tpu_custom_call.1} parent=1 // pred_check
      %p156 = pneg %p47
    $region31: #{tpu_custom_call.1} parent=1 // pred_check_branch
      %158 = sbr.rel (%p156) target = $region33
    $region32: #{tpu_custom_call.1} parent=1 // pred_region
      %v159 = vld [vmem:[#allocation2] sm:$0xff]
      %v160 = vld [vmem:[#allocation2 + $0x8] sm:$0xff]
      %v161 = vld [vmem:[%s3] sm:$0x1]
      %v163 = vlaneseq
      %v164 = vshrl.u32 %v163, 7
      %v165 = vsub.s32 0, %v164
      %v166 = vrot.slane %v161, %v165
      %v168 = vadd.f32 %v159, %v166
      %v169 = vadd.f32 %v160, %v166
      %v170 = vld [vmem:[#allocation3] sm:$0xff]
      %v171 = vld [vmem:[#allocation3 + $0x8] sm:$0xff]
      %v172 = vmul.f32 %v170, 2.0
      %v173 = vmul.f32 %v171, 2.0
      %v174 = vadd.f32 %v172, 512.0
      %v175 = vadd.f32 %v173, 512.0
      %v176 = vld [vmem:[%s2] sm:$0x1]
      %v178 = vlaneseq
      %v179 = vshrl.u32 %v178, 7
      %v180 = vsub.s32 0, %v179
      %v181 = vrot.slane %v176, %v180
      %184 = vset.pattern.permute.xlu0 0
      %185 = vperm.xlu0 %184, %v174
      %v186 = vpop.permute.xlu0 %185
      %189 = vset.pattern.permute.xlu0 0
      %190 = vperm.xlu0 %189, %v175
      %v191 = vpop.permute.xlu0 %190
      %v193 = vadd.f32 %v181, %v186
      %v194 = vadd.f32 %v181, %v191
      %v195 = vrcp.pop %v193
      %v196 = vrcp.pop %v194
      %v197 = vmul.f32 %v181, %v195
      %v198 = vmul.f32 %v181, %v196
      %v199 = vmul.f32 %v197, %v168
      %v200 = vmul.f32 %v198, %v169
      %v201 = vpack.c.bf16 %v200, %v199
      %v203 = vunpack.c.l.b16 %v201
      %v204 = vunpack.c.h.b16 %v201
      %v205 = vpack.c.b16 %v203, %v203
      %v206 = vpack.c.b16 %v204, %v204
      %209 = vst [vmem:[#allocation9] sm:$0xf] %v205
      %210 = vst [vmem:[#allocation9 + $0x4] sm:$0xf] %v206
    $region33: #{tpu_custom_call.1} parent=1 // pred_fallthru
      _
    // Predicated region
    $region34: #{tpu_custom_call.1} parent=1 // pred_check
      _
    $region35: #{tpu_custom_call.1} parent=1 // pred_check_branch
      %212 = sbr.rel (0) target = $region37
    $region36: #{tpu_custom_call.1} parent=1 // pred_region
      %s214 = ssub.s32 128, 128
      %215 = vsyncadd [#allocation6], %s214
      %s216 = sshll.u32 [#allocation9], 4
      %s217 = int_to_ptr.vmem [resolvable:$true] %s216
      %222 = dma.vmem_to_hbm [thread:$0]  %s217, 128, %s4, [#allocation6], 64, 64, 4
    $region37: #{tpu_custom_call.1} parent=1 // pred_fallthru
      _
    // Predicated region
    $region38: #{tpu_custom_call.1} parent=1 // pred_check
      _
    $region39: #{tpu_custom_call.1} parent=1 // pred_check_branch
      %224 = sbr.rel (0) target = $region41
    $region40: #{tpu_custom_call.1} parent=1 // pred_region
      %225 = dma.done [#allocation6], 128
    $region41: #{tpu_custom_call.1} parent=1 // pred_fallthru
      _
    %226 = vsyncpa [#allocation5], 1
    %227 = vsyncpa [#allocation8], 1
    %228 = vsyncpa [#allocation6], 1

</llo_original>
